<compile_context>
chip_gen: v5e
topology: v5e:2x2
jax: 0.10.0
libtpu: 0.0.40
codegen_flags: <defaults>
</compile_context>

<pallas_src>
import functools

import jax
import jax.numpy as jnp
from jax.experimental import pallas as pl
from jax.experimental.pallas import tpu as pltpu


# --------------------------------------------------------------------------
# Helpers
# --------------------------------------------------------------------------
def _round_up(x: int, m: int) -> int:
    return (x + m - 1) // m * m


_VMEM_BUDGET_BYTES = 48 * 1024 * 1024   # conservative: fits v7x's 64 MiB/TC with headroom
_TARGET_X_BYTES_PER_STEP = 4 << 20      # ~4 MiB of x per step amortizes ~0.35us step overhead
_MIN_X_BYTES_PER_STEP = 1 << 20


def _choose_tile_n(n: int, k_in: int, k_out_pad: int, x_itemsize: int) -> int:
    """Pick the N-tile.

    Sized by bytes-per-step (target ~4 MiB of x) and by VMEM footprint
    (2 x-bufs + 2 out-bufs + double-buffered W within the 48 MiB budget).
    When N is large, keep >=4 grid steps (>=2 per v7x TensorCore) so each core
    can double-buffer its DMAs.  Prefer an exact divisor of N (no partial edge
    block); otherwise rely on Pallas edge masking -- never a host-side pad.
    """
    row_in = k_in * x_itemsize
    row_out = k_out_pad * 4
    w_bytes = 2 * k_in * k_out_pad * 4          # W double-buffered by default pipeline
    tn_vmem = (_VMEM_BUDGET_BYTES - w_bytes) // (2 * (row_in + row_out))
    tn_bytes = _TARGET_X_BYTES_PER_STEP // row_in
    tn = max(8, min(tn_vmem, tn_bytes))
    tn -= tn % 8
    if n <= tn:
        return n                                 # single step; block == full array dim
    # v7x: >=2 steps per TensorCore when each step still moves >=1 MiB of x.
    min_tn = max(8, (_MIN_X_BYTES_PER_STEP // row_in) // 8 * 8)
    if (n // 4) >= min_tn:
        tn = min(tn, (n // 4) // 8 * 8)
    # Prefer an exact divisor of N (multiple of 8) -> no partial edge block.
    lo = max(8, tn - 2048)
    for cand in range(tn, lo - 1, -8):
        if n % cand == 0:
            return cand
    return tn                                    # edge block masked by Pallas


def n_sh(sh_degree_max: int) -> int:
    return sum(2 * l + 1 for l in range(0, sh_degree_max + 1, 2))


# --------------------------------------------------------------------------
# Per-parameter weight packing (hoist out of the forward path / cache it)
# --------------------------------------------------------------------------
def pack_y_inv(y_inv):
    """Pack Y_inv (A,B,C,L,P) into a lane-dense block-diagonal matrix of shape
    (A*B*P*C, round_up(A*B*C*L, 128)).

    Rows are ordered (a,b,p,c) to match x's native layout; columns (a,b,c,l)
    to match the output's native layout, so the big-tensor reshapes in the
    forward pass are free.  Zero columns pad K_out to a multiple of 128 so the
    kernel's output stores are unmasked.
    """
    A, B, C, L, P = y_inv.shape
    k_in = A * B * P * C
    k_out = A * B * C * L
    k_out_pad = _round_up(k_out, 128)
    w5 = jnp.transpose(y_inv, (0, 1, 2, 4, 3)).astype(jnp.float32)     # (A,B,C,P,L)
    eye_abc = jnp.eye(A * B * C, dtype=jnp.float32).reshape(A, B, C, A, B, C)
    # TODO(synk): block-diagonal packing is a small-group-count trick; W grows
    # as (A*B*C)^2 and MXU density is 1/(A*B*C).  For large TI*TE*shells,
    # switch to a per-(a,b,c)-group grid axis with (P,L) weights instead.
    w_bd = jnp.einsum("abcpl,abcxyz->abpcxyzl", w5, eye_abc).reshape(k_in, k_out)
    if k_out_pad != k_out:
        w_bd = jnp.pad(w_bd, ((0, 0), (0, k_out_pad - k_out)))          # tiny
    return w_bd


# --------------------------------------------------------------------------
# Pallas kernel: one lane-dense MXU matmul per N-tile
# --------------------------------------------------------------------------
def _signal_to_s2_kernel(x_ref, w_ref, o_ref):
    # x_ref: (TN, K_in)   w_ref: (K_in, K_out_pad)   o_ref: (TN, K_out_pad)
    o_ref[...] = jnp.dot(
        x_ref[...], w_ref[...], preferred_element_type=jnp.float32
    ).astype(o_ref.dtype)


def signal_to_s2_apply(x, w_packed, n_sh_coeffs):
    """out = einsum('nabpc,abclp->nabcl', x, Y_inv), given the packed weight."""
    N, A, B, P, C = x.shape
    L = n_sh_coeffs
    k_in = A * B * P * C
    k_out = A * B * C * L
    k_in_w, k_out_pad = w_packed.shape
    assert k_in_w == k_in and k_out_pad >= k_out, "packed weight / x shape mismatch"

    # No wrapper-side cast pass over the big tensor: bf16 x is used as-is
    # (f32 accumulation; note the 1e-4 tolerance only applies to the f32 path),
    # anything else is f32 (astype is a no-op for f32 inputs).
    if x.dtype == jnp.bfloat16:
        x_flat = x.reshape(N, k_in)                       # free view
        w = w_packed.astype(jnp.bfloat16)                 # tiny
    else:
        x_flat = x.astype(jnp.float32).reshape(N, k_in)   # free view for f32 input
        w = w_packed

    tn = _choose_tile_n(N, k_in, k_out_pad, x_flat.dtype.itemsize)
    grid = (pl.cdiv(N, tn),)

    row_in = k_in * x_flat.dtype.itemsize
    row_out = k_out_pad * 4
    footprint = 2 * tn * (row_in + row_out) + 2 * k_in * k_out_pad * 4
    vmem_limit = max(16 << 20, min(int(footprint * 3 // 2) + (4 << 20), 56 << 20))

    cost = pl.CostEstimate(
        flops=2 * N * A * B * C * P * L,                  # true useful flops
        transcendentals=0,
        bytes_accessed=(N * k_in * x_flat.dtype.itemsize
                        + k_in * k_out_pad * w.dtype.itemsize
                        + N * k_out_pad * 4),
    )

    out_flat = pl.pallas_call(
        _signal_to_s2_kernel,
        out_shape=jax.ShapeDtypeStruct((N, k_out_pad), jnp.float32),
        grid_spec=pltpu.PrefetchScalarGridSpec(
            num_scalar_prefetch=0,
            grid=grid,
            in_specs=[
                # X: streamed, one (TN, K_in) tile per step.
                pl.BlockSpec((tn, k_in), lambda i: (i, 0)),
                # W: constant index_map -> fetched once, stays VMEM-resident
                # (single-buffering it would only reclaim K_in*K_out_pad*4 B,
                #  negligible at these group counts).
                pl.BlockSpec((k_in, k_out_pad), lambda i: (0, 0)),
            ],
            out_specs=pl.BlockSpec((tn, k_out_pad), lambda i: (i, 0)),
        ),
        compiler_params=pltpu.CompilerParams(
            dimension_semantics=("parallel",),
            vmem_limit_bytes=vmem_limit,
        ),
        cost_estimate=cost,
    )(x_flat, w)

    if k_out_pad != k_out:
        out_flat = out_flat[:, :k_out]                    # drop zero-padding columns
    return out_flat.reshape(N, A, B, C, L)


def signal_to_s2_forward(x, y_inv):
    """Convenience wrapper (packs the weight every call; prefer caching
    pack_y_inv(y_inv) with the parameter and calling signal_to_s2_apply)."""
    A, B, C, L, P = y_inv.shape
    return signal_to_s2_apply(x, pack_y_inv(y_inv), L)


# --------------------------------------------------------------------------
# Deterministic parameter construction (mirrors __init__ shapes)
# --------------------------------------------------------------------------
def make_y_inv(key, A, B, C, P, sh_degree_max):
    """Deterministically build Y_inv of shape (A, B, C, L, P)."""
    # TODO(synk): the real module builds a Descoteaux real-SH basis from
    # cart2sphere(gradients) on the host (numpy) and inverts it ('lms' /
    # 'gram_schmidt' / ...); here we use a deterministic random basis of the
    # correct shape with the 'lms' (pseudo-inverse) inversion.
    L = n_sh(sh_degree_max)
    basis = jax.random.normal(key, (A, B, C, P, L), dtype=jnp.float32)
    y_inv = jnp.linalg.pinv(basis)                        # (A, B, C, L, P)
    return y_inv.astype(jnp.float32)


# --------------------------------------------------------------------------
# Demo / self-check
# --------------------------------------------------------------------------
if __name__ == "__main__":
    key = jax.random.PRNGKey(0)
    k_x, k_w = jax.random.split(key)

    # Small shapes consistent with the module: batch N, TI=A, TE=B,
    # P gradient directions, C shells, sh_degree_max=4 -> L=15.
    N, A, B, P, C = 512, 1, 2, 32, 3
    sh_degree_max = 4
    L = n_sh(sh_degree_max)

    x = jax.random.normal(k_x, (N, A, B, P, C), dtype=jnp.float32)
    y_inv = make_y_inv(k_w, A, B, C, P, sh_degree_max)    # (A, B, C, 15, P)

    # Hoist the per-parameter weight packing out of the forward path.
    w_packed = jax.block_until_ready(pack_y_inv(y_inv))
    fwd = jax.jit(functools.partial(signal_to_s2_apply, n_sh_coeffs=L))

    out = jax.block_until_ready(fwd(x, w_packed))

    # Reference check against plain-JAX einsum (same as torch.einsum string).
    ref = jnp.einsum("nabpc,abclp->nabcl", x, y_inv)
    assert out.shape == (N, A, B, C, L)
    assert jnp.allclose(out, ref, atol=1e-4, rtol=1e-4)

    print("KERNEL_OK")
</pallas_src>

<mosaic_0001>
module attributes {stable_mosaic.version = 11 : i64} {
  func.func @_signal_to_s2_kernel(%arg0: i32, %arg1: memref<512x192xf32, #tpu.memory_space<vmem>>, %arg2: memref<192x128xf32, #tpu.memory_space<vmem>>, %arg3: memref<512x128xf32, #tpu.memory_space<vmem>>) attributes {dimension_semantics = [#tpu.dimension_semantics<parallel>], iteration_bounds = array<i64: 1>, scalar_prefetch = 0 : i64, scratch_operands = 0 : i64, tpu.core_type = #tpu.core_type<tc>, window_params = [{transform_indices = @transform_0, window_bounds = array<i64: 512, 192>}, {pipeline_mode = #tpu.pipeline_mode<synchronous>, transform_indices = @transform_1, window_bounds = array<i64: 192, 128>}, {transform_indices = @transform_2, window_bounds = array<i64: 512, 128>}]} {
    %c0 = arith.constant 0 : index
    %c0_0 = arith.constant 0 : index
    %0 = vector.load %arg1[%c0, %c0_0] : memref<512x192xf32, #tpu.memory_space<vmem>>, vector<512x192xf32>
    %c0_1 = arith.constant 0 : index
    %c0_2 = arith.constant 0 : index
    %1 = vector.load %arg2[%c0_1, %c0_2] : memref<192x128xf32, #tpu.memory_space<vmem>>, vector<192x128xf32>
    %cst = arith.constant dense<0.000000e+00> : vector<512x128xf32>
    %2 = tpu.matmul %0, %1, %cst {dimension_numbers = #tpu.dot_dimension_numbers<[1], [0], [0], [1], [0, 0, 1, 1], [], []>} : vector<512x192xf32>, vector<192x128xf32>, vector<512x128xf32> -> vector<512x128xf32>
    %c0_3 = arith.constant 0 : index
    %c0_4 = arith.constant 0 : index
    %3 = vector.load %arg3[%c0_3, %c0_4] : memref<512x128xf32, #tpu.memory_space<vmem>>, vector<512x128xf32>
    tpu.vector_store %arg3[%c0_3, %c0_4], %2 {strides = array<i32>} : memref<512x128xf32, #tpu.memory_space<vmem>>, vector<512x128xf32>,
    return
  }
  func.func @transform_0(%arg0: i32) -> (i32, i32) {
    %c0_i32 = arith.constant 0 : i32
    %c0_i32_0 = arith.constant 0 : i32
    return %arg0, %c0_i32 : i32, i32
  }
  func.func @transform_1(%arg0: i32) -> (i32, i32) {
    %c0_i32 = arith.constant 0 : i32
    %c0_i32_0 = arith.constant 0 : i32
    %c0_i32_1 = arith.constant 0 : i32
    return %c0_i32, %c0_i32_0 : i32, i32
  }
  func.func @transform_2(%arg0: i32) -> (i32, i32) {
    %c0_i32 = arith.constant 0 : i32
    %c0_i32_0 = arith.constant 0 : i32
    return %arg0, %c0_i32 : i32, i32
  }
}

</mosaic_0001>

<llo_original>
// kernel: signal_to_s2_apply.1
$region0: #{signal_to_s2_apply.1}
  #allocation0 [shape = 'u32[]', space=smem, size = 0x4, offset = 0x4, fixed_abs, tag = 'smem constant byte address 0x4 - core index']
  #allocation1 [shape = 'u32[72,128]{1,0:T(1,128)}', space=vmem, size = 0x9000, scoped, tag = 'internal scratch']
  %s0 = inlined_call_operand.vmem [shape: f32[512,192], index: 0, kind: input, shape index: {}]
  %s1 = inlined_call_operand.vmem [shape: f32[192,128], index: 1, kind: input, shape index: {}]
  %s2 = inlined_call_operand.vmem [shape: f32[512,128], index: 2, kind: output, shape index: {}]
  %s3 = sld [smem:[#allocation0]]
  $region18: #{signal_to_s2_apply.1} parent=0
    _
  %s5 = ssub.s32 1, %s3
  %s6 = scalar_select 0, %s5, %s3
  // Predicated region
  $region2: #{signal_to_s2_apply.1} parent=0 // pred_check
    _
  $region3: #{signal_to_s2_apply.1} parent=0 // pred_check_branch
    %8 = sbr.rel (0) target = $region5
  $region4: #{signal_to_s2_apply.1} parent=0 // pred_region
    _
  $region5: #{signal_to_s2_apply.1} parent=0 // pred_fallthru
    _
  // Predicated region
  $region6: #{signal_to_s2_apply.1} parent=0 // pred_check
    _
  $region7: #{signal_to_s2_apply.1} parent=0 // pred_check_branch
    %10 = sbr.rel (0) target = $region9
  $region8: #{signal_to_s2_apply.1} parent=0 // pred_region
    _
  $region9: #{signal_to_s2_apply.1} parent=0 // pred_fallthru
    _
  %v11 = vld [vmem:[%s0] sm:$0xff]
  %v12 = vld [vmem:[%s0 + $0x8] sm:$0xff]
  %v13 = vld [vmem:[%s0 + $0x10] sm:$0xff]
  %v14 = vld [vmem:[%s0 + $0x18] sm:$0xff]
  %v15 = vld [vmem:[%s0 + $0x20] sm:$0xff]
  %v16 = vld [vmem:[%s0 + $0x28] sm:$0xff]
  %v17 = vld [vmem:[%s0 + $0x30] sm:$0xff]
  %v18 = vld [vmem:[%s0 + $0x38] sm:$0xff]
  %v19 = vld [vmem:[%s0 + $0x40] sm:$0xff]
  %v20 = vld [vmem:[%s0 + $0x48] sm:$0xff]
  %v21 = vld [vmem:[%s0 + $0x50] sm:$0xff]
  %v22 = vld [vmem:[%s0 + $0x58] sm:$0xff]
  %v23 = vld [vmem:[%s0 + $0x60] sm:$0xff]
  %v24 = vld [vmem:[%s0 + $0x68] sm:$0xff]
  %v25 = vld [vmem:[%s0 + $0x70] sm:$0xff]
  %v26 = vld [vmem:[%s0 + $0x78] sm:$0xff]
  %v27 = vld [vmem:[%s0 + $0x80] sm:$0xff]
  %v28 = vld [vmem:[%s0 + $0x88] sm:$0xff]
  %v29 = vld [vmem:[%s0 + $0x90] sm:$0xff]
  %v30 = vld [vmem:[%s0 + $0x98] sm:$0xff]
  %v31 = vld [vmem:[%s0 + $0xa0] sm:$0xff]
  %v32 = vld [vmem:[%s0 + $0xa8] sm:$0xff]
  %v33 = vld [vmem:[%s0 + $0xb0] sm:$0xff]
  %v34 = vld [vmem:[%s0 + $0xb8] sm:$0xff]
  %v35 = vld [vmem:[%s0 + $0xc0] sm:$0xff]
  %v36 = vld [vmem:[%s0 + $0xc8] sm:$0xff]
  %v37 = vld [vmem:[%s0 + $0xd0] sm:$0xff]
  %v38 = vld [vmem:[%s0 + $0xd8] sm:$0xff]
  %v39 = vld [vmem:[%s0 + $0xe0] sm:$0xff]
  %v40 = vld [vmem:[%s0 + $0xe8] sm:$0xff]
  %v41 = vld [vmem:[%s0 + $0xf0] sm:$0xff]
  %v42 = vld [vmem:[%s0 + $0xf8] sm:$0xff]
  %v43 = vld [vmem:[%s0 + $0x100] sm:$0xff]
  %v44 = vld [vmem:[%s0 + $0x108] sm:$0xff]
  %v45 = vld [vmem:[%s0 + $0x110] sm:$0xff]
  %v46 = vld [vmem:[%s0 + $0x118] sm:$0xff]
  %v47 = vld [vmem:[%s0 + $0x120] sm:$0xff]
  %v48 = vld [vmem:[%s0 + $0x128] sm:$0xff]
  %v49 = vld [vmem:[%s0 + $0x130] sm:$0xff]
  %v50 = vld [vmem:[%s0 + $0x138] sm:$0xff]
  %v51 = vld [vmem:[%s0 + $0x140] sm:$0xff]
  %v52 = vld [vmem:[%s0 + $0x148] sm:$0xff]
  %v53 = vld [vmem:[%s0 + $0x150] sm:$0xff]
  %v54 = vld [vmem:[%s0 + $0x158] sm:$0xff]
  %v55 = vld [vmem:[%s0 + $0x160] sm:$0xff]
  %v56 = vld [vmem:[%s0 + $0x168] sm:$0xff]
  %v57 = vld [vmem:[%s0 + $0x170] sm:$0xff]
  %v58 = vld [vmem:[%s0 + $0x178] sm:$0xff]
  %v59 = vld [vmem:[%s0 + $0x180] sm:$0xff]
  %v60 = vld [vmem:[%s0 + $0x188] sm:$0xff]
  %v61 = vld [vmem:[%s0 + $0x190] sm:$0xff]
  %v62 = vld [vmem:[%s0 + $0x198] sm:$0xff]
  %v63 = vld [vmem:[%s0 + $0x1a0] sm:$0xff]
  %v64 = vld [vmem:[%s0 + $0x1a8] sm:$0xff]
  %v65 = vld [vmem:[%s0 + $0x1b0] sm:$0xff]
  %v66 = vld [vmem:[%s0 + $0x1b8] sm:$0xff]
  %v67 = vld [vmem:[%s0 + $0x1c0] sm:$0xff]
  %v68 = vld [vmem:[%s0 + $0x1c8] sm:$0xff]
  %v69 = vld [vmem:[%s0 + $0x1d0] sm:$0xff]
  %v70 = vld [vmem:[%s0 + $0x1d8] sm:$0xff]
  %v71 = vld [vmem:[%s0 + $0x1e0] sm:$0xff]
  %v72 = vld [vmem:[%s0 + $0x1e8] sm:$0xff]
  %v73 = vld [vmem:[%s0 + $0x1f0] sm:$0xff]
  %v74 = vld [vmem:[%s0 + $0x1f8] sm:$0xff]
  %v75 = vld [vmem:[%s0 + $0x200] sm:$0xff]
  %v76 = vld [vmem:[%s0 + $0x208] sm:$0xff]
  %v77 = vld [vmem:[%s0 + $0x210] sm:$0xff]
  %v78 = vld [vmem:[%s0 + $0x218] sm:$0xff]
  %v79 = vld [vmem:[%s0 + $0x220] sm:$0xff]
  %v80 = vld [vmem:[%s0 + $0x228] sm:$0xff]
  %v81 = vld [vmem:[%s0 + $0x230] sm:$0xff]
  %v82 = vld [vmem:[%s0 + $0x238] sm:$0xff]
  %v83 = vld [vmem:[%s0 + $0x240] sm:$0xff]
  %v84 = vld [vmem:[%s0 + $0x248] sm:$0xff]
  %v85 = vld [vmem:[%s0 + $0x250] sm:$0xff]
  %v86 = vld [vmem:[%s0 + $0x258] sm:$0xff]
  %v87 = vld [vmem:[%s0 + $0x260] sm:$0xff]
  %v88 = vld [vmem:[%s0 + $0x268] sm:$0xff]
  %v89 = vld [vmem:[%s0 + $0x270] sm:$0xff]
  %v90 = vld [vmem:[%s0 + $0x278] sm:$0xff]
  %v91 = vld [vmem:[%s0 + $0x280] sm:$0xff]
  %v92 = vld [vmem:[%s0 + $0x288] sm:$0xff]
  %v93 = vld [vmem:[%s0 + $0x290] sm:$0xff]
  %v94 = vld [vmem:[%s0 + $0x298] sm:$0xff]
  %v95 = vld [vmem:[%s0 + $0x2a0] sm:$0xff]
  %v96 = vld [vmem:[%s0 + $0x2a8] sm:$0xff]
  %v97 = vld [vmem:[%s0 + $0x2b0] sm:$0xff]
  %v98 = vld [vmem:[%s0 + $0x2b8] sm:$0xff]
  %v99 = vld [vmem:[%s0 + $0x2c0] sm:$0xff]
  %v100 = vld [vmem:[%s0 + $0x2c8] sm:$0xff]
  %v101 = vld [vmem:[%s0 + $0x2d0] sm:$0xff]
  %v102 = vld [vmem:[%s0 + $0x2d8] sm:$0xff]
  %v103 = vld [vmem:[%s0 + $0x2e0] sm:$0xff]
  %v104 = vld [vmem:[%s0 + $0x2e8] sm:$0xff]
  %v105 = vld [vmem:[%s0 + $0x2f0] sm:$0xff]
  %v106 = vld [vmem:[%s0 + $0x2f8] sm:$0xff]
  %v107 = vld [vmem:[%s0 + $0x300] sm:$0xff]
  %v108 = vld [vmem:[%s0 + $0x308] sm:$0xff]
  %v109 = vld [vmem:[%s0 + $0x310] sm:$0xff]
  %v110 = vld [vmem:[%s0 + $0x318] sm:$0xff]
  %v111 = vld [vmem:[%s0 + $0x320] sm:$0xff]
  %v112 = vld [vmem:[%s0 + $0x328] sm:$0xff]
  %v113 = vld [vmem:[%s0 + $0x330] sm:$0xff]
  %v114 = vld [vmem:[%s0 + $0x338] sm:$0xff]
  %v115 = vld [vmem:[%s0 + $0x340] sm:$0xff]
  %v116 = vld [vmem:[%s0 + $0x348] sm:$0xff]
  %v117 = vld [vmem:[%s0 + $0x350] sm:$0xff]
  %v118 = vld [vmem:[%s0 + $0x358] sm:$0xff]
  %v119 = vld [vmem:[%s0 + $0x360] sm:$0xff]
  %v120 = vld [vmem:[%s0 + $0x368] sm:$0xff]
  %v121 = vld [vmem:[%s0 + $0x370] sm:$0xff]
  %v122 = vld [vmem:[%s0 + $0x378] sm:$0xff]
  %v123 = vld [vmem:[%s0 + $0x380] sm:$0xff]
  %v124 = vld [vmem:[%s0 + $0x388] sm:$0xff]
  %v125 = vld [vmem:[%s0 + $0x390] sm:$0xff]
  %v126 = vld [vmem:[%s0 + $0x398] sm:$0xff]
  %v127 = vld [vmem:[%s0 + $0x3a0] sm:$0xff]
  %v128 = vld [vmem:[%s0 + $0x3a8] sm:$0xff]
  %v129 = vld [vmem:[%s0 + $0x3b0] sm:$0xff]
  %v130 = vld [vmem:[%s0 + $0x3b8] sm:$0xff]
  %v131 = vld [vmem:[%s0 + $0x3c0] sm:$0xff]
  %v132 = vld [vmem:[%s0 + $0x3c8] sm:$0xff]
  %v133 = vld [vmem:[%s0 + $0x3d0] sm:$0xff]
  %v134 = vld [vmem:[%s0 + $0x3d8] sm:$0xff]
  %v135 = vld [vmem:[%s0 + $0x3e0] sm:$0xff]
  %v136 = vld [vmem:[%s0 + $0x3e8] sm:$0xff]
  %v137 = vld [vmem:[%s0 + $0x3f0] sm:$0xff]
  %v138 = vld [vmem:[%s0 + $0x3f8] sm:$0xff]
  %v139 = vld [vmem:[%s1] sm:$0xff]
  %v140 = vld [vmem:[%s1 + $0x8] sm:$0xff]
  %v141 = vld [vmem:[%s1 + $0x10] sm:$0xff]
  %v142 = vld [vmem:[%s1 + $0x18] sm:$0xff]
  %v143 = vld [vmem:[%s1 + $0x20] sm:$0xff]
  %v144 = vld [vmem:[%s1 + $0x28] sm:$0xff]
  %v145 = vld [vmem:[%s1 + $0x30] sm:$0xff]
  %v146 = vld [vmem:[%s1 + $0x38] sm:$0xff]
  %v147 = vld [vmem:[%s1 + $0x40] sm:$0xff]
  %v148 = vld [vmem:[%s1 + $0x48] sm:$0xff]
  %v149 = vld [vmem:[%s1 + $0x50] sm:$0xff]
  %v150 = vld [vmem:[%s1 + $0x58] sm:$0xff]
  %v151 = vld [vmem:[%s1 + $0x60] sm:$0xff]
  %v152 = vld [vmem:[%s1 + $0x68] sm:$0xff]
  %v153 = vld [vmem:[%s1 + $0x70] sm:$0xff]
  %v154 = vld [vmem:[%s1 + $0x78] sm:$0xff]
  %v155 = vld [vmem:[%s1 + $0x80] sm:$0xff]
  %v156 = vld [vmem:[%s1 + $0x88] sm:$0xff]
  %v157 = vld [vmem:[%s1 + $0x90] sm:$0xff]
  %v158 = vld [vmem:[%s1 + $0x98] sm:$0xff]
  %v159 = vld [vmem:[%s1 + $0xa0] sm:$0xff]
  %v160 = vld [vmem:[%s1 + $0xa8] sm:$0xff]
  %v161 = vld [vmem:[%s1 + $0xb0] sm:$0xff]
  %v162 = vld [vmem:[%s1 + $0xb8] sm:$0xff]
  %vm163 = vcmask 523264
  %v165 = vsel %vm163, %v12, 0
  %v168 = vsel %vm163, %v14, 0
  %v171 = vsel %vm163, %v16, 0
  %v174 = vsel %vm163, %v18, 0
  %v177 = vsel %vm163, %v20, 0
  %v180 = vsel %vm163, %v22, 0
  %v183 = vsel %vm163, %v24, 0
  %v186 = vsel %vm163, %v26, 0
  %v189 = vsel %vm163, %v28, 0
  %v192 = vsel %vm163, %v30, 0
  %v195 = vsel %vm163, %v32, 0
  %v198 = vsel %vm163, %v34, 0
  %v201 = vsel %vm163, %v36, 0
  %v204 = vsel %vm163, %v38, 0
  %v207 = vsel %vm163, %v40, 0
  %v210 = vsel %vm163, %v42, 0
  %v213 = vsel %vm163, %v44, 0
  %v216 = vsel %vm163, %v46, 0
  %v219 = vsel %vm163, %v48, 0
  %v222 = vsel %vm163, %v50, 0
  %v225 = vsel %vm163, %v52, 0
  %v228 = vsel %vm163, %v54, 0
  %v231 = vsel %vm163, %v56, 0
  %v234 = vsel %vm163, %v58, 0
  %v237 = vsel %vm163, %v60, 0
  %v240 = vsel %vm163, %v62, 0
  %v243 = vsel %vm163, %v64, 0
  %v246 = vsel %vm163, %v66, 0
  %v249 = vsel %vm163, %v68, 0
  %v252 = vsel %vm163, %v70, 0
  %v255 = vsel %vm163, %v72, 0
  %v258 = vsel %vm163, %v74, 0
  %v261 = vsel %vm163, %v76, 0
  %v264 = vsel %vm163, %v78, 0
  %v267 = vsel %vm163, %v80, 0
  %v270 = vsel %vm163, %v82, 0
  %v273 = vsel %vm163, %v84, 0
  %v276 = vsel %vm163, %v86, 0
  %v279 = vsel %vm163, %v88, 0
  %v282 = vsel %vm163, %v90, 0
  %v285 = vsel %vm163, %v92, 0
  %v288 = vsel %vm163, %v94, 0
  %v291 = vsel %vm163, %v96, 0
  %v294 = vsel %vm163, %v98, 0
  %v297 = vsel %vm163, %v100, 0
  %v300 = vsel %vm163, %v102, 0
  %v303 = vsel %vm163, %v104, 0
  %v306 = vsel %vm163, %v106, 0
  %v309 = vsel %vm163, %v108, 0
  %v312 = vsel %vm163, %v110, 0
  %v315 = vsel %vm163, %v112, 0
  %v318 = vsel %vm163, %v114, 0
  %v321 = vsel %vm163, %v116, 0
  %v324 = vsel %vm163, %v118, 0
  %v327 = vsel %vm163, %v120, 0
  %v330 = vsel %vm163, %v122, 0
  %v333 = vsel %vm163, %v124, 0
  %v336 = vsel %vm163, %v126, 0
  %v339 = vsel %vm163, %v128, 0
  %v342 = vsel %vm163, %v130, 0
  %v345 = vsel %vm163, %v132, 0
  %v348 = vsel %vm163, %v134, 0
  %v351 = vsel %vm163, %v136, 0
  %v354 = vsel %vm163, %v138, 0
  %356 = vmatpush.msra.mxu0 %v154
  %357 = vmatpush.msra.mxu0 %v153
  %358 = vmatpush.msra.mxu0 %v152
  %359 = vmatpush.msra.mxu0 %v151
  %360 = vmatpush.msra.mxu0 %v150
  %361 = vmatpush.msra.mxu0 %v149
  %362 = vmatpush.msra.mxu0 %v148
  %363 = vmatpush.msra.mxu0 %v147
  %364 = vmatpush.msra.mxu0 %v146
  %365 = vmatpush.msra.mxu0 %v145
  %366 = vmatpush.msra.mxu0 %v144
  %367 = vmatpush.msra.mxu0 %v143
  %368 = vmatpush.msra.mxu0 %v142
  %369 = vmatpush.msra.mxu0 %v141
  %370 = vmatpush.msra.mxu0 %v140
  %371 = vmatpush.msra.mxu0 %v139
  %372 = vmatmul.f32.gmra.mxu0 %v11
  %v373 = vpop.f32.mrf.mxu0
  %v374 = vadd.f32 0.0, %v373
  %375 = vmatmul.f32.gmra.mxu0 %v13
  %v376 = vpop.f32.mrf.mxu0
  %v377 = vadd.f32 0.0, %v376
  %378 = vmatmul.f32.gmra.mxu0 %v15
  %v379 = vpop.f32.mrf.mxu0
  %v380 = vadd.f32 0.0, %v379
  %381 = vmatmul.f32.gmra.mxu0 %v17
  %v382 = vpop.f32.mrf.mxu0
  %v383 = vadd.f32 0.0, %v382
  %384 = vmatmul.f32.gmra.mxu0 %v19
  %v385 = vpop.f32.mrf.mxu0
  %v386 = vadd.f32 0.0, %v385
  %387 = vmatmul.f32.gmra.mxu0 %v21
  %v388 = vpop.f32.mrf.mxu0
  %v389 = vadd.f32 0.0, %v388
  %390 = vmatmul.f32.gmra.mxu0 %v23
  %v391 = vpop.f32.mrf.mxu0
  %v392 = vadd.f32 0.0, %v391
  %393 = vmatmul.f32.gmra.mxu0 %v25
  %v394 = vpop.f32.mrf.mxu0
  %v395 = vadd.f32 0.0, %v394
  %396 = vmatmul.f32.gmra.mxu0 %v27
  %v397 = vpop.f32.mrf.mxu0
  %v398 = vadd.f32 0.0, %v397
  %399 = vmatmul.f32.gmra.mxu0 %v29
  %v400 = vpop.f32.mrf.mxu0
  %v401 = vadd.f32 0.0, %v400
  %402 = vmatmul.f32.gmra.mxu0 %v31
  %v403 = vpop.f32.mrf.mxu0
  %v404 = vadd.f32 0.0, %v403
  %405 = vmatmul.f32.gmra.mxu0 %v33
  %v406 = vpop.f32.mrf.mxu0
  %v407 = vadd.f32 0.0, %v406
  %408 = vmatmul.f32.gmra.mxu0 %v35
  %v409 = vpop.f32.mrf.mxu0
  %v410 = vadd.f32 0.0, %v409
  %411 = vmatmul.f32.gmra.mxu0 %v37
  %v412 = vpop.f32.mrf.mxu0
  %v413 = vadd.f32 0.0, %v412
  %414 = vmatmul.f32.gmra.mxu0 %v39
  %v415 = vpop.f32.mrf.mxu0
  %v416 = vadd.f32 0.0, %v415
  %417 = vmatmul.f32.gmra.mxu0 %v41
  %v418 = vpop.f32.mrf.mxu0
  %v419 = vadd.f32 0.0, %v418
  %420 = vmatmul.f32.gmra.mxu0 %v43
  %v421 = vpop.f32.mrf.mxu0
  %v422 = vadd.f32 0.0, %v421
  %423 = vmatmul.f32.gmra.mxu0 %v45
  %v424 = vpop.f32.mrf.mxu0
  %v425 = vadd.f32 0.0, %v424
  %426 = vmatmul.f32.gmra.mxu0 %v47
  %v427 = vpop.f32.mrf.mxu0
  %v428 = vadd.f32 0.0, %v427
  %429 = vmatmul.f32.gmra.mxu0 %v49
  %v430 = vpop.f32.mrf.mxu0
  %v431 = vadd.f32 0.0, %v430
  %432 = vmatmul.f32.gmra.mxu0 %v51
  %v433 = vpop.f32.mrf.mxu0
  %v434 = vadd.f32 0.0, %v433
  %435 = vmatmul.f32.gmra.mxu0 %v53
  %v436 = vpop.f32.mrf.mxu0
  %v437 = vadd.f32 0.0, %v436
  %438 = vmatmul.f32.gmra.mxu0 %v55
  %v439 = vpop.f32.mrf.mxu0
  %v440 = vadd.f32 0.0, %v439
  %441 = vmatmul.f32.gmra.mxu0 %v57
  %v442 = vpop.f32.mrf.mxu0
  %v443 = vadd.f32 0.0, %v442
  %444 = vmatmul.f32.gmra.mxu0 %v59
  %v445 = vpop.f32.mrf.mxu0
  %v446 = vadd.f32 0.0, %v445
  %447 = vmatmul.f32.gmra.mxu0 %v61
  %v448 = vpop.f32.mrf.mxu0
  %v449 = vadd.f32 0.0, %v448
  %450 = vmatmul.f32.gmra.mxu0 %v63
  %v451 = vpop.f32.mrf.mxu0
  %v452 = vadd.f32 0.0, %v451
  %453 = vmatmul.f32.gmra.mxu0 %v65
  %v454 = vpop.f32.mrf.mxu0
  %v455 = vadd.f32 0.0, %v454
  %456 = vmatmul.f32.gmra.mxu0 %v67
  %v457 = vpop.f32.mrf.mxu0
  %v458 = vadd.f32 0.0, %v457
  %459 = vmatmul.f32.gmra.mxu0 %v69
  %v460 = vpop.f32.mrf.mxu0
  %v461 = vadd.f32 0.0, %v460
  %462 = vmatmul.f32.gmra.mxu0 %v71
  %v463 = vpop.f32.mrf.mxu0
  %v464 = vadd.f32 0.0, %v463
  %465 = vmatmul.f32.gmra.mxu0 %v73
  %v466 = vpop.f32.mrf.mxu0
  %v467 = vadd.f32 0.0, %v466
  %468 = vmatmul.f32.gmra.mxu0 %v75
  %v469 = vpop.f32.mrf.mxu0
  %v470 = vadd.f32 0.0, %v469
  %471 = vmatmul.f32.gmra.mxu0 %v77
  %v472 = vpop.f32.mrf.mxu0
  %v473 = vadd.f32 0.0, %v472
  %474 = vmatmul.f32.gmra.mxu0 %v79
  %v475 = vpop.f32.mrf.mxu0
  %v476 = vadd.f32 0.0, %v475
  %477 = vmatmul.f32.gmra.mxu0 %v81
  %v478 = vpop.f32.mrf.mxu0
  %v479 = vadd.f32 0.0, %v478
  %480 = vmatmul.f32.gmra.mxu0 %v83
  %v481 = vpop.f32.mrf.mxu0
  %v482 = vadd.f32 0.0, %v481
  %483 = vmatmul.f32.gmra.mxu0 %v85
  %v484 = vpop.f32.mrf.mxu0
  %v485 = vadd.f32 0.0, %v484
  %486 = vmatmul.f32.gmra.mxu0 %v87
  %v487 = vpop.f32.mrf.mxu0
  %v488 = vadd.f32 0.0, %v487
  %489 = vmatmul.f32.gmra.mxu0 %v89
  %v490 = vpop.f32.mrf.mxu0
  %v491 = vadd.f32 0.0, %v490
  %492 = vmatmul.f32.gmra.mxu0 %v91
  %v493 = vpop.f32.mrf.mxu0
  %v494 = vadd.f32 0.0, %v493
  %495 = vmatmul.f32.gmra.mxu0 %v93
  %v496 = vpop.f32.mrf.mxu0
  %v497 = vadd.f32 0.0, %v496
  %498 = vmatmul.f32.gmra.mxu0 %v95
  %v499 = vpop.f32.mrf.mxu0
  %v500 = vadd.f32 0.0, %v499
  %501 = vmatmul.f32.gmra.mxu0 %v97
  %v502 = vpop.f32.mrf.mxu0
  %v503 = vadd.f32 0.0, %v502
  %504 = vmatmul.f32.gmra.mxu0 %v99
  %v505 = vpop.f32.mrf.mxu0
  %v506 = vadd.f32 0.0, %v505
  %507 = vmatmul.f32.gmra.mxu0 %v101
  %v508 = vpop.f32.mrf.mxu0
  %v509 = vadd.f32 0.0, %v508
  %510 = vmatmul.f32.gmra.mxu0 %v103
  %v511 = vpop.f32.mrf.mxu0
  %v512 = vadd.f32 0.0, %v511
  %513 = vmatmul.f32.gmra.mxu0 %v105
  %v514 = vpop.f32.mrf.mxu0
  %v515 = vadd.f32 0.0, %v514
  %516 = vmatmul.f32.gmra.mxu0 %v107
  %v517 = vpop.f32.mrf.mxu0
  %v518 = vadd.f32 0.0, %v517
  %519 = vmatmul.f32.gmra.mxu0 %v109
  %v520 = vpop.f32.mrf.mxu0
  %v521 = vadd.f32 0.0, %v520
  %522 = vmatmul.f32.gmra.mxu0 %v111
  %v523 = vpop.f32.mrf.mxu0
  %v524 = vadd.f32 0.0, %v523
  %525 = vmatmul.f32.gmra.mxu0 %v113
  %v526 = vpop.f32.mrf.mxu0
  %v527 = vadd.f32 0.0, %v526
  %528 = vmatmul.f32.gmra.mxu0 %v115
  %v529 = vpop.f32.mrf.mxu0
  %v530 = vadd.f32 0.0, %v529
  %531 = vmatmul.f32.gmra.mxu0 %v117
  %v532 = vpop.f32.mrf.mxu0
  %v533 = vadd.f32 0.0, %v532
  %534 = vmatmul.f32.gmra.mxu0 %v119
  %v535 = vpop.f32.mrf.mxu0
  %v536 = vadd.f32 0.0, %v535
  %537 = vmatmul.f32.gmra.mxu0 %v121
  %v538 = vpop.f32.mrf.mxu0
  %v539 = vadd.f32 0.0, %v538
  %540 = vmatmul.f32.gmra.mxu0 %v123
  %v541 = vpop.f32.mrf.mxu0
  %v542 = vadd.f32 0.0, %v541
  %543 = vmatmul.f32.gmra.mxu0 %v125
  %v544 = vpop.f32.mrf.mxu0
  %v545 = vadd.f32 0.0, %v544
  %546 = vmatmul.f32.gmra.mxu0 %v127
  %v547 = vpop.f32.mrf.mxu0
  %v548 = vadd.f32 0.0, %v547
  %549 = vmatmul.f32.gmra.mxu0 %v129
  %v550 = vpop.f32.mrf.mxu0
  %v551 = vadd.f32 0.0, %v550
  %552 = vmatmul.f32.gmra.mxu0 %v131
  %v553 = vpop.f32.mrf.mxu0
  %v554 = vadd.f32 0.0, %v553
  %555 = vmatmul.f32.gmra.mxu0 %v133
  %v556 = vpop.f32.mrf.mxu0
  %v557 = vadd.f32 0.0, %v556
  %558 = vmatmul.f32.gmra.mxu0 %v135
  %v559 = vpop.f32.mrf.mxu0
  %v560 = vadd.f32 0.0, %v559
  %561 = vmatmul.f32.gmra.mxu0 %v137
  %v562 = vpop.f32.mrf.mxu0
  %v563 = vadd.f32 0.0, %v562
  %564 = vdwg.mxu0
  %565 = vmatpush.msra.mxu0 0.0
  %566 = vmatpush.msra.mxu0 0.0
  %567 = vmatpush.msra.mxu0 0.0
  %568 = vmatpush.msra.mxu0 0.0
  %569 = vmatpush.msra.mxu0 0.0
  %570 = vmatpush.msra.mxu0 0.0
  %571 = vmatpush.msra.mxu0 0.0
  %572 = vmatpush.msra.mxu0 0.0
  %573 = vmatpush.msra.mxu0 %v162
  %574 = vmatpush.msra.mxu0 %v161
  %575 = vmatpush.msra.mxu0 %v160
  %576 = vmatpush.msra.mxu0 %v159
  %577 = vmatpush.msra.mxu0 %v158
  %578 = vmatpush.msra.mxu0 %v157
  %579 = vmatpush.msra.mxu0 %v156
  %580 = vmatpush.msra.mxu0 %v155
  %581 = vmatmul.f32.gmra.mxu0 %v165
  %v582 = vpop.f32.mrf.mxu0
  %v583 = vadd.f32 %v374, %v582
  %584 = vmatmul.f32.gmra.mxu0 %v168
  %v585 = vpop.f32.mrf.mxu0
  %v586 = vadd.f32 %v377, %v585
  %587 = vmatmul.f32.gmra.mxu0 %v171
  %v588 = vpop.f32.mrf.mxu0
  %v589 = vadd.f32 %v380, %v588
  %590 = vmatmul.f32.gmra.mxu0 %v174
  %v591 = vpop.f32.mrf.mxu0
  %v592 = vadd.f32 %v383, %v591
  %593 = vmatmul.f32.gmra.mxu0 %v177
  %v594 = vpop.f32.mrf.mxu0
  %v595 = vadd.f32 %v386, %v594
  %596 = vmatmul.f32.gmra.mxu0 %v180
  %v597 = vpop.f32.mrf.mxu0
  %v598 = vadd.f32 %v389, %v597
  %599 = vmatmul.f32.gmra.mxu0 %v183
  %v600 = vpop.f32.mrf.mxu0
  %v601 = vadd.f32 %v392, %v600
  %602 = vmatmul.f32.gmra.mxu0 %v186
  %v603 = vpop.f32.mrf.mxu0
  %v604 = vadd.f32 %v395, %v603
  %605 = vmatmul.f32.gmra.mxu0 %v189
  %v606 = vpop.f32.mrf.mxu0
  %v607 = vadd.f32 %v398, %v606
  %608 = vmatmul.f32.gmra.mxu0 %v192
  %v609 = vpop.f32.mrf.mxu0
  %v610 = vadd.f32 %v401, %v609
  %611 = vmatmul.f32.gmra.mxu0 %v195
  %v612 = vpop.f32.mrf.mxu0
  %v613 = vadd.f32 %v404, %v612
  %614 = vmatmul.f32.gmra.mxu0 %v198
  %v615 = vpop.f32.mrf.mxu0
  %v616 = vadd.f32 %v407, %v615
  %617 = vmatmul.f32.gmra.mxu0 %v201
  %v618 = vpop.f32.mrf.mxu0
  %v619 = vadd.f32 %v410, %v618
  %620 = vmatmul.f32.gmra.mxu0 %v204
  %v621 = vpop.f32.mrf.mxu0
  %v622 = vadd.f32 %v413, %v621
  %623 = vmatmul.f32.gmra.mxu0 %v207
  %v624 = vpop.f32.mrf.mxu0
  %v625 = vadd.f32 %v416, %v624
  %626 = vmatmul.f32.gmra.mxu0 %v210
  %v627 = vpop.f32.mrf.mxu0
  %v628 = vadd.f32 %v419, %v627
  %629 = vmatmul.f32.gmra.mxu0 %v213
  %v630 = vpop.f32.mrf.mxu0
  %v631 = vadd.f32 %v422, %v630
  %632 = vmatmul.f32.gmra.mxu0 %v216
  %v633 = vpop.f32.mrf.mxu0
  %v634 = vadd.f32 %v425, %v633
  %635 = vmatmul.f32.gmra.mxu0 %v219
  %v636 = vpop.f32.mrf.mxu0
  %v637 = vadd.f32 %v428, %v636
  %638 = vmatmul.f32.gmra.mxu0 %v222
  %v639 = vpop.f32.mrf.mxu0
  %v640 = vadd.f32 %v431, %v639
  %641 = vmatmul.f32.gmra.mxu0 %v225
  %v642 = vpop.f32.mrf.mxu0
  %v643 = vadd.f32 %v434, %v642
  %644 = vmatmul.f32.gmra.mxu0 %v228
  %v645 = vpop.f32.mrf.mxu0
  %v646 = vadd.f32 %v437, %v645
  %647 = vmatmul.f32.gmra.mxu0 %v231
  %v648 = vpop.f32.mrf.mxu0
  %v649 = vadd.f32 %v440, %v648
  %650 = vmatmul.f32.gmra.mxu0 %v234
  %v651 = vpop.f32.mrf.mxu0
  %v652 = vadd.f32 %v443, %v651
  %653 = vmatmul.f32.gmra.mxu0 %v237
  %v654 = vpop.f32.mrf.mxu0
  %v655 = vadd.f32 %v446, %v654
  %656 = vmatmul.f32.gmra.mxu0 %v240
  %v657 = vpop.f32.mrf.mxu0
  %v658 = vadd.f32 %v449, %v657
  %659 = vmatmul.f32.gmra.mxu0 %v243
  %v660 = vpop.f32.mrf.mxu0
  %v661 = vadd.f32 %v452, %v660
  %662 = vmatmul.f32.gmra.mxu0 %v246
  %v663 = vpop.f32.mrf.mxu0
  %v664 = vadd.f32 %v455, %v663
  %665 = vmatmul.f32.gmra.mxu0 %v249
  %v666 = vpop.f32.mrf.mxu0
  %v667 = vadd.f32 %v458, %v666
  %668 = vmatmul.f32.gmra.mxu0 %v252
  %v669 = vpop.f32.mrf.mxu0
  %v670 = vadd.f32 %v461, %v669
  %671 = vmatmul.f32.gmra.mxu0 %v255
  %v672 = vpop.f32.mrf.mxu0
  %v673 = vadd.f32 %v464, %v672
  %674 = vmatmul.f32.gmra.mxu0 %v258
  %v675 = vpop.f32.mrf.mxu0
  %v676 = vadd.f32 %v467, %v675
  %677 = vmatmul.f32.gmra.mxu0 %v261
  %v678 = vpop.f32.mrf.mxu0
  %v679 = vadd.f32 %v470, %v678
  %680 = vmatmul.f32.gmra.mxu0 %v264
  %v681 = vpop.f32.mrf.mxu0
  %v682 = vadd.f32 %v473, %v681
  %683 = vmatmul.f32.gmra.mxu0 %v267
  %v684 = vpop.f32.mrf.mxu0
  %v685 = vadd.f32 %v476, %v684
  %686 = vmatmul.f32.gmra.mxu0 %v270
  %v687 = vpop.f32.mrf.mxu0
  %v688 = vadd.f32 %v479, %v687
  %689 = vmatmul.f32.gmra.mxu0 %v273
  %v690 = vpop.f32.mrf.mxu0
  %v691 = vadd.f32 %v482, %v690
  %692 = vmatmul.f32.gmra.mxu0 %v276
  %v693 = vpop.f32.mrf.mxu0
  %v694 = vadd.f32 %v485, %v693
  %695 = vmatmul.f32.gmra.mxu0 %v279
  %v696 = vpop.f32.mrf.mxu0
  %v697 = vadd.f32 %v488, %v696
  %698 = vmatmul.f32.gmra.mxu0 %v282
  %v699 = vpop.f32.mrf.mxu0
  %v700 = vadd.f32 %v491, %v699
  %701 = vmatmul.f32.gmra.mxu0 %v285
  %v702 = vpop.f32.mrf.mxu0
  %v703 = vadd.f32 %v494, %v702
  %704 = vmatmul.f32.gmra.mxu0 %v288
  %v705 = vpop.f32.mrf.mxu0
  %v706 = vadd.f32 %v497, %v705
  %707 = vmatmul.f32.gmra.mxu0 %v291
  %v708 = vpop.f32.mrf.mxu0
  %v709 = vadd.f32 %v500, %v708
  %710 = vmatmul.f32.gmra.mxu0 %v294
  %v711 = vpop.f32.mrf.mxu0
  %v712 = vadd.f32 %v503, %v711
  %713 = vmatmul.f32.gmra.mxu0 %v297
  %v714 = vpop.f32.mrf.mxu0
  %v715 = vadd.f32 %v506, %v714
  %716 = vmatmul.f32.gmra.mxu0 %v300
  %v717 = vpop.f32.mrf.mxu0
  %v718 = vadd.f32 %v509, %v717
  %719 = vmatmul.f32.gmra.mxu0 %v303
  %v720 = vpop.f32.mrf.mxu0
  %v721 = vadd.f32 %v512, %v720
  %722 = vmatmul.f32.gmra.mxu0 %v306
  %v723 = vpop.f32.mrf.mxu0
  %v724 = vadd.f32 %v515, %v723
  %725 = vmatmul.f32.gmra.mxu0 %v309
  %v726 = vpop.f32.mrf.mxu0
  %v727 = vadd.f32 %v518, %v726
  %728 = vmatmul.f32.gmra.mxu0 %v312
  %v729 = vpop.f32.mrf.mxu0
  %v730 = vadd.f32 %v521, %v729
  %731 = vmatmul.f32.gmra.mxu0 %v315
  %v732 = vpop.f32.mrf.mxu0
  %v733 = vadd.f32 %v524, %v732
  %734 = vmatmul.f32.gmra.mxu0 %v318
  %v735 = vpop.f32.mrf.mxu0
  %v736 = vadd.f32 %v527, %v735
  %737 = vmatmul.f32.gmra.mxu0 %v321
  %v738 = vpop.f32.mrf.mxu0
  %v739 = vadd.f32 %v530, %v738
  %740 = vmatmul.f32.gmra.mxu0 %v324
  %v741 = vpop.f32.mrf.mxu0
  %v742 = vadd.f32 %v533, %v741
  %743 = vmatmul.f32.gmra.mxu0 %v327
  %v744 = vpop.f32.mrf.mxu0
  %v745 = vadd.f32 %v536, %v744
  %746 = vmatmul.f32.gmra.mxu0 %v330
  %v747 = vpop.f32.mrf.mxu0
  %v748 = vadd.f32 %v539, %v747
  %749 = vmatmul.f32.gmra.mxu0 %v333
  %v750 = vpop.f32.mrf.mxu0
  %v751 = vadd.f32 %v542, %v750
  %752 = vmatmul.f32.gmra.mxu0 %v336
  %v753 = vpop.f32.mrf.mxu0
  %v754 = vadd.f32 %v545, %v753
  %755 = vmatmul.f32.gmra.mxu0 %v339
  %v756 = vpop.f32.mrf.mxu0
  %v757 = vadd.f32 %v548, %v756
  %758 = vmatmul.f32.gmra.mxu0 %v342
  %v759 = vpop.f32.mrf.mxu0
  %v760 = vadd.f32 %v551, %v759
  %761 = vmatmul.f32.gmra.mxu0 %v345
  %v762 = vpop.f32.mrf.mxu0
  %v763 = vadd.f32 %v554, %v762
  %764 = vmatmul.f32.gmra.mxu0 %v348
  %v765 = vpop.f32.mrf.mxu0
  %v766 = vadd.f32 %v557, %v765
  %767 = vmatmul.f32.gmra.mxu0 %v351
  %v768 = vpop.f32.mrf.mxu0
  %v769 = vadd.f32 %v560, %v768
  %770 = vmatmul.f32.gmra.mxu0 %v354
  %v771 = vpop.f32.mrf.mxu0
  %v772 = vadd.f32 %v563, %v771
  %773 = vdwg.mxu0
  %774 = vst [vmem:[%s2] sm:$0xff] %v583
  %775 = vst [vmem:[%s2 + $0x8] sm:$0xff] %v586
  %776 = vst [vmem:[%s2 + $0x10] sm:$0xff] %v589
  %777 = vst [vmem:[%s2 + $0x18] sm:$0xff] %v592
  %778 = vst [vmem:[%s2 + $0x20] sm:$0xff] %v595
  %779 = vst [vmem:[%s2 + $0x28] sm:$0xff] %v598
  %780 = vst [vmem:[%s2 + $0x30] sm:$0xff] %v601
  %781 = vst [vmem:[%s2 + $0x38] sm:$0xff] %v604
  %782 = vst [vmem:[%s2 + $0x40] sm:$0xff] %v607
  %783 = vst [vmem:[%s2 + $0x48] sm:$0xff] %v610
  %784 = vst [vmem:[%s2 + $0x50] sm:$0xff] %v613
  %785 = vst [vmem:[%s2 + $0x58] sm:$0xff] %v616
  %786 = vst [vmem:[%s2 + $0x60] sm:$0xff] %v619
  %787 = vst [vmem:[%s2 + $0x68] sm:$0xff] %v622
  %788 = vst [vmem:[%s2 + $0x70] sm:$0xff] %v625
  %789 = vst [vmem:[%s2 + $0x78] sm:$0xff] %v628
  %790 = vst [vmem:[%s2 + $0x80] sm:$0xff] %v631
  %791 = vst [vmem:[%s2 + $0x88] sm:$0xff] %v634
  %792 = vst [vmem:[%s2 + $0x90] sm:$0xff] %v637
  %793 = vst [vmem:[%s2 + $0x98] sm:$0xff] %v640
  %794 = vst [vmem:[%s2 + $0xa0] sm:$0xff] %v643
  %795 = vst [vmem:[%s2 + $0xa8] sm:$0xff] %v646
  %796 = vst [vmem:[%s2 + $0xb0] sm:$0xff] %v649
  %797 = vst [vmem:[%s2 + $0xb8] sm:$0xff] %v652
  %798 = vst [vmem:[%s2 + $0xc0] sm:$0xff] %v655
  %799 = vst [vmem:[%s2 + $0xc8] sm:$0xff] %v658
  %800 = vst [vmem:[%s2 + $0xd0] sm:$0xff] %v661
  %801 = vst [vmem:[%s2 + $0xd8] sm:$0xff] %v664
  %802 = vst [vmem:[%s2 + $0xe0] sm:$0xff] %v667
  %803 = vst [vmem:[%s2 + $0xe8] sm:$0xff] %v670
  %804 = vst [vmem:[%s2 + $0xf0] sm:$0xff] %v673
  %805 = vst [vmem:[%s2 + $0xf8] sm:$0xff] %v676
  %806 = vst [vmem:[%s2 + $0x100] sm:$0xff] %v679
  %807 = vst [vmem:[%s2 + $0x108] sm:$0xff] %v682
  %808 = vst [vmem:[%s2 + $0x110] sm:$0xff] %v685
  %809 = vst [vmem:[%s2 + $0x118] sm:$0xff] %v688
  %810 = vst [vmem:[%s2 + $0x120] sm:$0xff] %v691
  %811 = vst [vmem:[%s2 + $0x128] sm:$0xff] %v694
  %812 = vst [vmem:[%s2 + $0x130] sm:$0xff] %v697
  %813 = vst [vmem:[%s2 + $0x138] sm:$0xff] %v700
  %814 = vst [vmem:[%s2 + $0x140] sm:$0xff] %v703
  %815 = vst [vmem:[%s2 + $0x148] sm:$0xff] %v706
  %816 = vst [vmem:[%s2 + $0x150] sm:$0xff] %v709
  %817 = vst [vmem:[%s2 + $0x158] sm:$0xff] %v712
  %818 = vst [vmem:[%s2 + $0x160] sm:$0xff] %v715
  %819 = vst [vmem:[%s2 + $0x168] sm:$0xff] %v718
  %820 = vst [vmem:[%s2 + $0x170] sm:$0xff] %v721
  %821 = vst [vmem:[%s2 + $0x178] sm:$0xff] %v724
  %822 = vst [vmem:[%s2 + $0x180] sm:$0xff] %v727
  %823 = vst [vmem:[%s2 + $0x188] sm:$0xff] %v730
  %824 = vst [vmem:[%s2 + $0x190] sm:$0xff] %v733
  %825 = vst [vmem:[%s2 + $0x198] sm:$0xff] %v736
  %826 = vst [vmem:[%s2 + $0x1a0] sm:$0xff] %v739
  %827 = vst [vmem:[%s2 + $0x1a8] sm:$0xff] %v742
  %828 = vst [vmem:[%s2 + $0x1b0] sm:$0xff] %v745
  %829 = vst [vmem:[%s2 + $0x1b8] sm:$0xff] %v748
  %830 = vst [vmem:[%s2 + $0x1c0] sm:$0xff] %v751
  %831 = vst [vmem:[%s2 + $0x1c8] sm:$0xff] %v754
  %832 = vst [vmem:[%s2 + $0x1d0] sm:$0xff] %v757
  %833 = vst [vmem:[%s2 + $0x1d8] sm:$0xff] %v760
  %834 = vst [vmem:[%s2 + $0x1e0] sm:$0xff] %v763
  %835 = vst [vmem:[%s2 + $0x1e8] sm:$0xff] %v766
  %836 = vst [vmem:[%s2 + $0x1f0] sm:$0xff] %v769
  %837 = vst [vmem:[%s2 + $0x1f8] sm:$0xff] %v772
  // Predicated region
  $region10: #{signal_to_s2_apply.1} parent=0 // pred_check
    _
  $region11: #{signal_to_s2_apply.1} parent=0 // pred_check_branch
    %839 = sbr.rel (0) target = $region13
  $region12: #{signal_to_s2_apply.1} parent=0 // pred_region
    _
  $region13: #{signal_to_s2_apply.1} parent=0 // pred_fallthru
    _
  // Predicated region
  $region14: #{signal_to_s2_apply.1} parent=0 // pred_check
    _
  $region15: #{signal_to_s2_apply.1} parent=0 // pred_check_branch
    %841 = sbr.rel (0) target = $region17
  $region16: #{signal_to_s2_apply.1} parent=0 // pred_region
    _
  $region17: #{signal_to_s2_apply.1} parent=0 // pred_fallthru
    _

</llo_original>
